<compile_context>
chip_gen: v5e
topology: v5e:2x2
jax: 0.10.0
libtpu: 0.0.40
codegen_flags: <defaults>
</compile_context>

<pallas_src>
import jax
import jax.numpy as jnp
from jax.experimental import pallas as pl
from jax.experimental.pallas import tpu as pltpu

_MiB = 1024 * 1024


def _crop_hw_kernel_factory(H, W, yl, yh, zl, zh):
    def kernel(x_ref, o_ref):
        # x_ref: (b_nc, 1, H, W) -> o_ref: (b_nc, 1, Ho, Wo)
        # The D crop was absorbed by the input index_map (pure pipelined DMA);
        # only the H / W crop happens here, as one direct slice write.
        o_ref[...] = x_ref[:, :, yl:H - yh, zl:W - zh]

    return kernel


def _vmem_capacity_bytes():
    try:
        return int(pltpu.get_tpu_info().vmem_capacity_bytes)
    except Exception:
        # Conservative fallback = v7x per-TensorCore VMEM.
        return 64 * _MiB


def image_crop(x, pad_size, *, block_budget_bytes=None):
    """Pallas implementation of ImageCrop.forward for a 5-D NCDHW tensor.

    Equivalent to PyTorch: x[:, :, xl:-xh, yl:-yh, zl:-zh]
    with (xl, xh, yl, yh, zl, zh) = padding applied to dims (D, H, W).
    """
    # --- Normalize padding (scalar, tuple, or list/sequence of 6). ---
    if isinstance(pad_size, (tuple, list)):
        pads = tuple(int(p) for p in pad_size)
    else:
        pads = tuple(int(pad_size) for _ in range(6))
    assert len(pads) == 6, "ImageCrop expects 6 crop amounts for a 5-D input."
    xl, xh, yl, yh, zl, zh = pads

    N, C, D, H, W = x.shape

    # PyTorch uses negative stop indices (e.g. xl:-xh); validate up front.
    assert xl >= 0 and yl >= 0 and zl >= 0, "crop starts must be >= 0"
    assert xh > 0 and yh > 0 and zh > 0, "crop ends must be > 0 (PyTorch uses -xh)"
    Do, Ho, Wo = D - xl - xh, H - yl - yh, W - zl - zh
    assert Do > 0 and Ho > 0 and Wo > 0, "crop amounts exceed input dims"

    B = N * C
    x_flat = x.reshape(B, D, H, W)
    itemsize = jnp.dtype(x.dtype).itemsize
    out_bytes = B * Do * Ho * Wo * itemsize

    # --- Chip-derived VMEM budget / limit. ---
    vmem_cap = _vmem_capacity_bytes()
    if block_budget_bytes is None:
        # ~16 MiB on v7x (64 MiB VMEM/TC), ~32 MiB on v5e/v6e (128 MiB).
        block_budget_bytes = max(4 * _MiB, vmem_cap // 4)

    # One (b, d) grid element moves one (H, W) slab in and one (Ho, Wo) slab
    # out; double-buffered by the auto-pipeline.
    slab_bytes = (H * W + Ho * Wo) * itemsize
    per_b_bytes = 2 * slab_bytes

    b_nc = max(1, min(B, block_budget_bytes // per_b_bytes))
    if B >= 2:
        # Keep >= 2 iterations on the leading "parallel" axis so v7x's second
        # TensorCore (and its DMA issue slots) gets a share of the copy.
        b_nc = min(b_nc, -(-B // 2))
    nb = pl.cdiv(B, b_nc)

    needed = 2 * b_nc * slab_bytes + 4 * _MiB       # pipeline buffers + margin
    vmem_cap_limit = min(vmem_cap * 3 // 4, 96 * _MiB)  # ~48 MiB v7x, 96 MiB v5e/v6e
    vmem_limit = int(min(vmem_cap_limit, max(32 * _MiB, needed)))
    # TODO(synk): if a single (H, W) slab ever exceeds the VMEM cap, tile H/W too.

    cost = pl.CostEstimate(
        flops=0, transcendentals=0,
        bytes_accessed=B * Do * H * W * itemsize + out_bytes)

    kernel = _crop_hw_kernel_factory(H, W, yl, yh, zl, zh)

    out_flat = pl.pallas_call(
        kernel,
        out_shape=jax.ShapeDtypeStruct((B, Do, Ho, Wo), x.dtype),
        grid_spec=pltpu.PrefetchScalarGridSpec(
            num_scalar_prefetch=0,
            grid=(nb, Do),
            # D block size is 1, so the returned D index is an element offset:
            # the xl crop becomes a pure DMA offset (cropped slices never read).
            in_specs=[pl.BlockSpec((b_nc, 1, H, W),
                                   lambda b, d: (b, d + xl, 0, 0))],
            out_specs=pl.BlockSpec((b_nc, 1, Ho, Wo),
                                   lambda b, d: (b, d, 0, 0)),
        ),
        compiler_params=pltpu.CompilerParams(
            dimension_semantics=("parallel", "parallel"),
            vmem_limit_bytes=vmem_limit),
        cost_estimate=cost,
    )(x_flat)

    return out_flat.reshape(N, C, Do, Ho, Wo)


if __name__ == "__main__":
    key = jax.random.PRNGKey(0)

    # --- Test 1: scalar pad, even B (exercises b_nc batching). ---
    N, C, D, H, W = 2, 3, 8, 16, 16
    pad_size = 2  # -> padding = (2, 2, 2, 2, 2, 2)
    x = jax.random.normal(key, (N, C, D, H, W), dtype=jnp.float32)
    ref = x[:, :, pad_size:-pad_size, pad_size:-pad_size, pad_size:-pad_size]
    out = jax.block_until_ready(image_crop(x, pad_size))
    assert out.shape == ref.shape
    assert jnp.array_equal(out, ref), "Pallas ImageCrop mismatch (test 1)"

    # --- Test 2: list padding, asymmetric crops, prime-ish B (ragged block). ---
    N2, C2 = 1, 7
    pads2 = [2, 2, 4, 4, 1, 3]
    x2 = jax.random.normal(jax.random.PRNGKey(1), (N2, C2, D, H, W),
                           dtype=jnp.float32)
    ref2 = x2[:, :, 2:-2, 4:-4, 1:-3]
    out2 = jax.block_until_ready(image_crop(x2, pads2))
    assert out2.shape == ref2.shape
    assert jnp.array_equal(out2, ref2), "Pallas ImageCrop mismatch (test 2)"

    # --- Test 3: tiny budget forces b_nc = 1 (one slab per step). ---
    out3 = jax.block_until_ready(image_crop(x, pad_size, block_budget_bytes=1))
    assert out3.shape == ref.shape
    assert jnp.array_equal(out3, ref), "Pallas ImageCrop mismatch (test 3)"

    print("KERNEL_OK")
</pallas_src>

<mosaic_0001>
module attributes {stable_mosaic.version = 11 : i64} {
  func.func @kernel(%arg0: i32, %arg1: i32, %arg2: memref<3x1x16x16xf32, #tpu.memory_space<vmem>>, %arg3: memref<3x1x12x12xf32, #tpu.memory_space<vmem>>) attributes {dimension_semantics = [#tpu.dimension_semantics<parallel>, #tpu.dimension_semantics<parallel>], iteration_bounds = array<i64: 2, 4>, scalar_prefetch = 0 : i64, scratch_operands = 0 : i64, tpu.core_type = #tpu.core_type<tc>, window_params = [{transform_indices = @transform_0, window_bounds = array<i64: 3, 1, 16, 16>}, {transform_indices = @transform_1, window_bounds = array<i64: 3, 1, 12, 12>}]} {
    %c0 = arith.constant 0 : index
    %c0_0 = arith.constant 0 : index
    %c2 = arith.constant 2 : index
    %c2_1 = arith.constant 2 : index
    %0 = vector.load %arg2[%c0, %c0_0, %c2, %c2_1] : memref<3x1x16x16xf32, #tpu.memory_space<vmem>>, vector<3x1x12x12xf32>
    %c0_2 = arith.constant 0 : index
    %c0_3 = arith.constant 0 : index
    %c0_4 = arith.constant 0 : index
    %c0_5 = arith.constant 0 : index
    %1 = vector.load %arg3[%c0_2, %c0_3, %c0_4, %c0_5] : memref<3x1x12x12xf32, #tpu.memory_space<vmem>>, vector<3x1x12x12xf32>
    tpu.vector_store %arg3[%c0_2, %c0_3, %c0_4, %c0_5], %0 {strides = array<i32>} : memref<3x1x12x12xf32, #tpu.memory_space<vmem>>, vector<3x1x12x12xf32>,
    return
  }
  func.func @transform_0(%arg0: i32, %arg1: i32) -> (i32, i32, i32, i32) {
    %c2_i32 = arith.constant 2 : i32
    %0 = arith.addi %arg1, %c2_i32 : i32
    %c0_i32 = arith.constant 0 : i32
    %c0_i32_0 = arith.constant 0 : i32
    %c0_i32_1 = arith.constant 0 : i32
    return %arg0, %0, %c0_i32, %c0_i32_0 : i32, i32, i32, i32
  }
  func.func @transform_1(%arg0: i32, %arg1: i32) -> (i32, i32, i32, i32) {
    %c0_i32 = arith.constant 0 : i32
    %c0_i32_0 = arith.constant 0 : i32
    %c0_i32_1 = arith.constant 0 : i32
    return %arg0, %arg1, %c0_i32, %c0_i32_0 : i32, i32, i32, i32
  }
}

</mosaic_0001>

<llo_original>
// kernel: tpu_custom_call.1
$region0: #{tpu_custom_call.1}
  #allocation0 [shape = 'u32[]', space=smem, size = 0x4, offset = 0x4, fixed_abs, tag = 'smem constant byte address 0x4 - core index']
  #allocation1 [shape = 'u32[72,128]{1,0:T(1,128)}', space=vmem, size = 0x9000, scoped, tag = 'internal scratch']
  #allocation5 [shape = 's32[]', space=sflag, size = 0x4, offset = 0, fixed_abs, tag = 'sflag constant byte address 0x0 - dummy sync flag']
  %s0 = inlined_call_operand.hbm [shape: f32[6,8,16,16], index: 0, kind: input, shape index: {}]
  %s1 = inlined_call_operand.vmem [shape: f32[6,4,12,12], index: 1, kind: output, shape index: {}]
  %s2 = sld [smem:[#allocation0]]
  $region75: #{tpu_custom_call.1} parent=0
    _
  %s4 = ssub.s32 1, %s2
  %s5 = scalar_select 0, %s4, %s2
  $region1: #{tpu_custom_call.1} parent=0
    #allocation2 [shape = 'u8[49152]{0}', space=vmem, size = 0xc000, scoped, tag = 'input window, operand 0']
    #allocation3 [shape = 's32[2]{0}', space=sflag, size = 0x8, scoped, tag = 'scoped memory for tpu_custom_call.1']
    #allocation4 [shape = 'u8[49152]{0}', space=vmem, size = 0xc000, scoped, tag = 'output window, operand 0']
    %6 = vsyncpa [#allocation3], 0
    %s7 = scalar_lea.sflag [#allocation3], 1
    %8 = vsyncpa %s7, 0
    loop: start=0, step=1, limit=10
    $region2: #{tpu_custom_call.1} parent=1 // loop_pre_header
      _
    $region3: #{tpu_custom_call.1} parent=1 // loop_header
      %s10 = sphi 0, %s14
      %p11 = scmp.ge.s32.totalorder %s10, 10
      %s17 = sphi 0, %s29
      %s18 = sphi 0, %s25
      %s19 = sphi 0, %s17
      %s20 = sphi 0, %s18
      %s21 = sphi 0, %s19
      %s22 = sphi 0, %s20
      %s36 = sphi 0, %s38
      %s39 = sphi 0, %s36
      %s40 = sphi 0, %s39
      %s56 = sphi 0, %s40
      %s64 = sphi 0, %s66
      %s67 = sphi 0, %s64
      %s68 = sphi 0, %s67
      %s84 = sphi 0, %s68
    $region4: #{tpu_custom_call.1} parent=1 // loop_header_branch
      %13 = sbr.rel (%p11) target = $region8
    $region5: #{tpu_custom_call.1} parent=1 // loop_body
      %s15 = ssub.s32 %s10, 1
      %s16 = ssub.s32 %s10, 2
      %s23 = sadd.s32 1, %s18
      %p24 = scmp.ge.s32.totalorder %s23, 4
      %s25 = scalar_select %p24, 0, %s23
      %s26 = sadd.s32 1, %s17
      %s27 = scalar_select %p24, %s26, %s17
      %p28 = scmp.ge.s32.totalorder %s27, 2
      %s29 = scalar_select %p28, 0, %s27
      %s30 = sadd.s32 %s18, 2
      %s31 = sadd.s32 %s25, 2
      %s32 = ssub.s32 %s17, %s29
      %s33 = ssub.s32 %s30, %s31
      %s34 = sor.u32 %s32, %s33
      %p35 = scmp.eq.s32.totalorder %s34, 0
      %s37 = sadd.s32 %s36, 1
      %s38 = scalar_select %p35, %s36, %s37
      %p41 = pneg %p35
      %p42 = scmp.eq.s32.totalorder %s10, 7
      %p43 = por %p41, %p42
      %p44 = scmp.ne.s32.totalorder %s36, %s39
      %p45 = scmp.eq.s32.totalorder %s10, 0
      %p46 = por %p44, %p45
      %p47 = scmp.ne.s32.totalorder %s36, %s39
      %p48 = scmp.eq.s32.totalorder %s15, 7
      %p49 = por %p47, %p48
      %p50 = scmp.ne.s32.totalorder %s39, %s40
      %p51 = scmp.eq.s32.totalorder %s15, 0
      %p52 = por %p50, %p51
      %p53 = scmp.ne.s32.totalorder %s39, %s40
      %p54 = scmp.eq.s32.totalorder %s16, 7
      %p55 = por %p53, %p54
      %p57 = scmp.ne.s32.totalorder %s40, %s56
      %p58 = scmp.eq.s32.totalorder %s16, 0
      %p59 = por %p57, %p58
      %s60 = ssub.s32 %s17, %s29
      %s61 = ssub.s32 %s18, %s25
      %s62 = sor.u32 %s60, %s61
      %p63 = scmp.eq.s32.totalorder %s62, 0
      %s65 = sadd.s32 %s64, 1
      %s66 = scalar_select %p63, %s64, %s65
      %p69 = pneg %p63
      %p70 = scmp.eq.s32.totalorder %s10, 7
      %p71 = por %p69, %p70
      %p72 = scmp.ne.s32.totalorder %s64, %s67
      %p73 = scmp.eq.s32.totalorder %s10, 0
      %p74 = por %p72, %p73
      %p75 = scmp.ne.s32.totalorder %s64, %s67
      %p76 = scmp.eq.s32.totalorder %s15, 7
      %p77 = por %p75, %p76
      %p78 = scmp.ne.s32.totalorder %s67, %s68
      %p79 = scmp.eq.s32.totalorder %s15, 0
      %p80 = por %p78, %p79
      %p81 = scmp.ne.s32.totalorder %s67, %s68
      %p82 = scmp.eq.s32.totalorder %s16, 7
      %p83 = por %p81, %p82
      %p85 = scmp.ne.s32.totalorder %s68, %s84
      %p86 = scmp.eq.s32.totalorder %s16, 0
      %p87 = por %p85, %p86
      %p88 = scmp.le.s32.totalorder 1, %s10
      %p89 = scmp.lt.s32.totalorder %s10, 9
      %p90 = pnand %p88, %p89
      %p91 = pneg %p90
      // Predicated region
      $region9: #{tpu_custom_call.1} parent=5 // pred_check
        _
      $region10: #{tpu_custom_call.1} parent=5 // pred_check_branch
        %93 = sbr.rel (%p90) target = $region12
      $region11: #{tpu_custom_call.1} parent=5 // pred_region
        %s94 = ssub.s32 %s10, 1
      $region12: #{tpu_custom_call.1} parent=5 // pred_fallthru
        _
      %p95 = scmp.lt.s32.totalorder %s10, 8
      // Predicated region
      $region13: #{tpu_custom_call.1} parent=5 // pred_check
        %p96 = pneg %p95
      $region14: #{tpu_custom_call.1} parent=5 // pred_check_branch
        %98 = sbr.rel (%p96) target = $region16
      $region15: #{tpu_custom_call.1} parent=5 // pred_region
        // Predicated region
        $region17: #{tpu_custom_call.1} parent=15 // pred_check
          %p99 = pneg %p46
        $region18: #{tpu_custom_call.1} parent=15 // pred_check_branch
          %101 = sbr.rel (%p99) target = $region20
        $region19: #{tpu_custom_call.1} parent=15 // pred_region
          #allocation6 [shape = 'u32[6]{0}', space=smem, size = 0x18, scoped, tag = 'DMA stride descriptor']
          %s102 = sand.u32 %s36, 1
          %s103 = scalar_lea.sflag [#allocation3], %s102
          %s104 = sand.u32 %s36, 1
          %s105 = smul.addr %s104, 48
          %s106 = scalar_lea.vmem [#allocation2], %s105
          %s107 = sadd.s32 %s18, 2
          %s108 = smul.u32 3, %s17
          %110 = vsyncadd %s103, 0
          %s111 = smul.addr %s107, 2
          %s112 = smul.addr %s108, 16
          %s113 = sadd.s32 %s111, %s112
          %s114 = smul.addr %s113, 8
          %s115 = scalar_lea.hbm %s0, %s114
          %s117 = sshll.u32 1, 14
          %s118 = sxor.u32 4294967295, %s117
          %s120 = sld [smem:[#allocation0]]
          %s121 = sadd.s32 2, %s120
          %s123 = sshll.u32 7, 26
          %s124 = sxor.u32 4294967295, %s123
          %s125 = sand.u32 0, %s124
          %s126 = sshll.u32 %s121, 26
          %s127 = sor.u32 %s125, %s126
          %s128 = sshll.u32 %s115, 4
          %s129 = int_to_ptr.hbm [resolvable:$true] %s128
          %s130 = sshll.u32 %s106, 4
          %s131 = int_to_ptr.vmem [resolvable:$true] %s130
          %137 = sst [smem:[#allocation6]] 2048
          %s138 = scalar_lea.smem [#allocation6], 1
          %139 = sst [smem:[%s138]] 256
          %s140 = scalar_lea.smem [#allocation6], 2
          %141 = sst [smem:[%s140]] 2
          %s142 = scalar_lea.smem [#allocation6], 3
          %143 = sst [smem:[%s142]] 128
          %s144 = scalar_lea.smem [#allocation6], 4
          %145 = sst [smem:[%s144]] 128
          %s146 = scalar_lea.smem [#allocation6], 5
          %147 = sst [smem:[%s146]] 8
          %149 = dma.general %s129, 768, %s131, %s103, [#allocation5], [#allocation6], %s127, 0
        $region20: #{tpu_custom_call.1} parent=15 // pred_fallthru
          _
      $region16: #{tpu_custom_call.1} parent=5 // pred_fallthru
        _
      %p150 = scmp.le.s32.totalorder 1, %s10
      %p151 = scmp.lt.s32.totalorder %s10, 9
      %p152 = pnand %p150, %p151
      %p153 = pneg %p152
      // Predicated region
      $region21: #{tpu_custom_call.1} parent=5 // pred_check
        _
      $region22: #{tpu_custom_call.1} parent=5 // pred_check_branch
        %155 = sbr.rel (%p152) target = $region24
      $region23: #{tpu_custom_call.1} parent=5 // pred_region
        %s156 = ssub.s32 %s10, 1
        %s157 = sand.u32 %s39, 1
        %s158 = scalar_lea.sflag [#allocation3], %s157
        %s159 = sand.u32 %s39, 1
        %s160 = smul.addr %s159, 48
        %s161 = scalar_lea.vmem [#allocation2], %s160
        // Predicated region
        $region25: #{tpu_custom_call.1} parent=23 // pred_check
          %p162 = pneg %p52
        $region26: #{tpu_custom_call.1} parent=23 // pred_check_branch
          %164 = sbr.rel (%p162) target = $region28
        $region27: #{tpu_custom_call.1} parent=23 // pred_region
          %166 = dma.done %s158, 768
        $region28: #{tpu_custom_call.1} parent=23 // pred_fallthru
          _
        %s167 = sand.u32 %s39, 1
        %s168 = scalar_lea.sflag [#allocation3], %s167
        %s169 = sand.u32 %s39, 1
        %s170 = smul.addr %s169, 48
        %s171 = scalar_lea.vmem [#allocation2], %s170
        %p172 = pneg %p52
        %p173 = pneg %p49
        %p174 = pneg %p80
        %p175 = pneg %p77
        %s176 = sand.u32 %s67, 1
        %s177 = sand.u32 %s67, 1
        %s178 = smul.addr %s177, 48
        %s179 = scalar_lea.vmem [#allocation4], %s178
        %s180 = sadd.s32 %s20, 2
        %s181 = smul.u32 3, %s19
        %s182 = smul.u32 3, %s19
        %v183 = vld [vmem:[%s161 + $0x2] sm:$0xff]
        %v184 = vld [vmem:[%s161 + $0xa] sm:$0xf]
        %v185 = vld [vmem:[%s161 + $0x12] sm:$0xff]
        %v186 = vld [vmem:[%s161 + $0x1a] sm:$0xf]
        %v187 = vld [vmem:[%s161 + $0x22] sm:$0xff]
        %v188 = vld [vmem:[%s161 + $0x2a] sm:$0xf]
        %195 = vrot.lane.b32.xlu0 %v183, 126
        %v196 = vpop.permute.xlu0 %195
        %197 = vrot.lane.b32.xlu0 %v184, 126
        %v198 = vpop.permute.xlu0 %197
        %199 = vrot.lane.b32.xlu0 %v185, 126
        %v200 = vpop.permute.xlu0 %199
        %201 = vrot.lane.b32.xlu0 %v186, 126
        %v202 = vpop.permute.xlu0 %201
        %203 = vrot.lane.b32.xlu0 %v187, 126
        %v204 = vpop.permute.xlu0 %203
        %205 = vrot.lane.b32.xlu0 %v188, 126
        %v206 = vpop.permute.xlu0 %205
        %vm213 = vcmask 97280
        %214 = vst.msk [vmem:[%s179] sm:$0xff] %vm213, %v196
        %vm215 = vcmask 93184
        %216 = vst.msk [vmem:[%s179 + $0x8] sm:$0xf] %vm215, %v198
        %217 = vst.msk [vmem:[%s179 + $0x10] sm:$0xff] %vm213, %v200
        %218 = vst.msk [vmem:[%s179 + $0x18] sm:$0xf] %vm215, %v202
        %219 = vst.msk [vmem:[%s179 + $0x20] sm:$0xff] %vm213, %v204
        %220 = vst.msk [vmem:[%s179 + $0x28] sm:$0xf] %vm215, %v206
        %s221 = sand.u32 %s67, 1
        %s222 = sand.u32 %s67, 1
        %s223 = smul.addr %s222, 48
        %s224 = scalar_lea.vmem [#allocation4], %s223
        // Predicated region
        $region29: #{tpu_custom_call.1} parent=23 // pred_check
          %p225 = pneg %p77
        $region30: #{tpu_custom_call.1} parent=23 // pred_check_branch
          %227 = sbr.rel (%p225) target = $region32
        $region31: #{tpu_custom_call.1} parent=23 // pred_region
          %s228 = smul.u32 3, %s19
          %s229 = smul.addr %s20, 2
          %s230 = smul.addr %s228, 8
          %s231 = sadd.s32 %s229, %s230
          %s232 = smul.addr %s231, 8
          %s233 = scalar_lea.vmem %s1, %s232
          // Predicated region
          $region33: #{tpu_custom_call.1} parent=31 // pred_check
            _
          $region34: #{tpu_custom_call.1} parent=31 // pred_check_branch
            %235 = sbr.rel (0) target = $region36
          $region35: #{tpu_custom_call.1} parent=31 // pred_region
            // Predicated region
            $region37: #{tpu_custom_call.1} parent=35 // pred_check
              _
            $region38: #{tpu_custom_call.1} parent=35 // pred_check_branch
              %237 = sbr.rel (0) target = $region40
            $region39: #{tpu_custom_call.1} parent=35 // pred_region
              // Predicated region
              $region52: #{tpu_custom_call.1} parent=39 // pred_check
                _
              $region53: #{tpu_custom_call.1} parent=39 // pred_check_branch
                %263 = sbr.rel (0) target = $region55
              $region54: #{tpu_custom_call.1} parent=39 // pred_region
                loop: start=0, step=1, limit=1
                $region56: #{tpu_custom_call.1} parent=54 // loop_pre_header
                  _
                $region57: #{tpu_custom_call.1} parent=54 // loop_header
                  %s265 = sphi 0, %s269
                  %p266 = scmp.ge.s32.totalorder %s265, 1
                  %s270 = sphi %s224, %s224
                  %s271 = sphi %s233, %s233
                $region58: #{tpu_custom_call.1} parent=54 // loop_header_branch
                  %268 = sbr.rel (%p266) target = $region62
                $region59: #{tpu_custom_call.1} parent=54 // loop_body
                  %v272 = vld [vmem:[%s270] sm:$0xff]
                  %273 = vst [vmem:[%s271] sm:$0xff] %v272
                  %v274 = vld [vmem:[%s270 + $0x8] sm:$0xff]
                  %275 = vst [vmem:[%s271 + $0x8] sm:$0xff] %v274
                  %v276 = vld [vmem:[%s270 + $0x10] sm:$0xff]
                  %277 = vst [vmem:[%s271 + $0x40] sm:$0xff] %v276
                  %v278 = vld [vmem:[%s270 + $0x18] sm:$0xff]
                  %279 = vst [vmem:[%s271 + $0x48] sm:$0xff] %v278
                  %v280 = vld [vmem:[%s270 + $0x20] sm:$0xff]
                  %281 = vst [vmem:[%s271 + $0x80] sm:$0xff] %v280
                  %v282 = vld [vmem:[%s270 + $0x28] sm:$0xff]
                  %283 = vst [vmem:[%s271 + $0x88] sm:$0xff] %v282
                $region60: #{tpu_custom_call.1} parent=54 // loop_footer
                  %s269 = sadd.s32 1, %s265
                $region61: #{tpu_custom_call.1} parent=54 // loop_footer_branch
                  %264 = sbr.rel target = $region57
                $region62: #{tpu_custom_call.1} parent=54 // loop_exit
                  _
              $region55: #{tpu_custom_call.1} parent=39 // pred_fallthru
                _
              // Predicated region
              $region63: #{tpu_custom_call.1} parent=39 // pred_check
                _
              $region64: #{tpu_custom_call.1} parent=39 // pred_check_branch
                %285 = sbr.rel target = $region66
              $region65: #{tpu_custom_call.1} parent=39 // pred_region
                _
              $region66: #{tpu_custom_call.1} parent=39 // pred_fallthru
                _
            $region40: #{tpu_custom_call.1} parent=35 // pred_fallthru
              _
            // Predicated region
            $region41: #{tpu_custom_call.1} parent=35 // pred_check
              _
            $region42: #{tpu_custom_call.1} parent=35 // pred_check_branch
              %239 = sbr.rel target = $region44
            $region43: #{tpu_custom_call.1} parent=35 // pred_region
              %s241 = ssub.s32 256, 1
              loop: start=0, step=1, limit=1
              $region45: #{tpu_custom_call.1} parent=43 // loop_pre_header
                _
              $region46: #{tpu_custom_call.1} parent=43 // loop_header
                %s243 = sphi 0, %s247
                %p244 = scmp.ge.s32.totalorder %s243, 1
                %s248 = sphi %s224, %s224
                %s249 = sphi %s233, %s233
              $region47: #{tpu_custom_call.1} parent=43 // loop_header_branch
                %246 = sbr.rel (%p244) target = $region51
              $region48: #{tpu_custom_call.1} parent=43 // loop_body
                %v250 = vld [vmem:[%s248] sm:%s241]
                %251 = vst [vmem:[%s249] sm:%s241] %v250
                %v252 = vld [vmem:[%s248 + $0x8] sm:%s241]
                %253 = vst [vmem:[%s249 + $0x8] sm:%s241] %v252
                %v254 = vld [vmem:[%s248 + $0x10] sm:%s241]
                %255 = vst [vmem:[%s249 + $0x40] sm:%s241] %v254
                %v256 = vld [vmem:[%s248 + $0x18] sm:%s241]
                %257 = vst [vmem:[%s249 + $0x48] sm:%s241] %v256
                %v258 = vld [vmem:[%s248 + $0x20] sm:%s241]
                %259 = vst [vmem:[%s249 + $0x80] sm:%s241] %v258
                %v260 = vld [vmem:[%s248 + $0x28] sm:%s241]
                %261 = vst [vmem:[%s249 + $0x88] sm:%s241] %v260
              $region49: #{tpu_custom_call.1} parent=43 // loop_footer
                %s247 = sadd.s32 1, %s243
              $region50: #{tpu_custom_call.1} parent=43 // loop_footer_branch
                %242 = sbr.rel target = $region46
              $region51: #{tpu_custom_call.1} parent=43 // loop_exit
                _
            $region44: #{tpu_custom_call.1} parent=35 // pred_fallthru
              _
          $region36: #{tpu_custom_call.1} parent=31 // pred_fallthru
            _
          %286 = vnop
        $region32: #{tpu_custom_call.1} parent=23 // pred_fallthru
          _
      $region24: #{tpu_custom_call.1} parent=5 // pred_fallthru
        _
      %p287 = scmp.le.s32.totalorder 2, %s10
      // Predicated region
      $region67: #{tpu_custom_call.1} parent=5 // pred_check
        %p288 = pneg %p287
      $region68: #{tpu_custom_call.1} parent=5 // pred_check_branch
        %290 = sbr.rel (%p288) target = $region70
      $region69: #{tpu_custom_call.1} parent=5 // pred_region
        %s291 = ssub.s32 %s10, 2
        // Predicated region
        $region71: #{tpu_custom_call.1} parent=69 // pred_check
          %p292 = pneg %p83
        $region72: #{tpu_custom_call.1} parent=69 // pred_check_branch
          %294 = sbr.rel (%p292) target = $region74
        $region73: #{tpu_custom_call.1} parent=69 // pred_region
          %s295 = sand.u32 %s68, 1
          %s296 = sand.u32 %s68, 1
          %s297 = smul.addr %s296, 48
          %s298 = scalar_lea.vmem [#allocation4], %s297
        $region74: #{tpu_custom_call.1} parent=69 // pred_fallthru
          _
      $region70: #{tpu_custom_call.1} parent=5 // pred_fallthru
        _
    $region6: #{tpu_custom_call.1} parent=1 // loop_footer
      %s14 = sadd.s32 1, %s10
    $region7: #{tpu_custom_call.1} parent=1 // loop_footer_branch
      %9 = sbr.rel target = $region3
    $region8: #{tpu_custom_call.1} parent=1 // loop_exit
      _
    %299 = vsyncpa [#allocation3], 1
    %s300 = scalar_lea.sflag [#allocation3], 1
    %301 = vsyncpa %s300, 1

</llo_original>
